<compile_context>
chip_gen: v7x
topology: tpu7x:2x2x1
jax: 0.10.0
libtpu: 0.0.40
codegen_flags: <defaults>
</compile_context>

<pallas_src>
import jax
import jax.numpy as jnp
from jax.experimental import pallas as pl
from jax.experimental.pallas import tpu as pltpu

IN_DIM = 784
H1 = 128
H2 = 64
OUT_DIM = 10
OUT_PAD = 128      # lane-dense padded output width (unmasked vst)

# Cap on the batch tile so 2x(TB*784*4) [f32 x, double-buffered]
# + 2x(TB*128*2) [bf16 out] + resident weights + intermediates stays
# comfortably under the 32 MiB default scoped VMEM limit (v7x-safe).
_MAX_TB = 3840


def mlp_kernel(x_ref, w1_ref, b1_ref, w2_ref, b2_ref, w3_ref, b3_ref, o_ref):
    # fc1 + relu: bf16 on the MXU (dominant matmul), f32 accumulation.
    # The f32 -> bf16 cast of x is VPU work hidden under the input DMA.
    x_bf = x_ref[...].astype(jnp.bfloat16)
    h1 = jnp.dot(x_bf, w1_ref[...], preferred_element_type=jnp.float32)
    h1 = jnp.maximum(h1 + b1_ref[...], 0.0)
    # fc2 + relu: tiny (<5% of FLOPs), keep f32 for precision -- HBM-bound anyway.
    h2 = jnp.dot(h1, w2_ref[...], preferred_element_type=jnp.float32)
    h2 = jnp.maximum(h2 + b2_ref[...], 0.0)
    # fc3 (no activation); 128 padded lanes -> unmasked, lane-dense store.
    out = jnp.dot(h2, w3_ref[...], preferred_element_type=jnp.float32)
    o_ref[...] = (out + b3_ref[...]).astype(o_ref.dtype)


def prepare_params(w1, b1, w2, b2, w3, b3):
    """One-time host prep: pad fc3 to 128 lanes, cast dominant weight to bf16."""
    w1p = w1.astype(jnp.bfloat16)                                # (784, 128) bf16
    b1f = b1.reshape(1, H1).astype(jnp.float32)
    w2f = w2.astype(jnp.float32)                                 # (128, 64)  f32
    b2f = b2.reshape(1, H2).astype(jnp.float32)
    w3p = jnp.zeros((H2, OUT_PAD), jnp.float32).at[:, :OUT_DIM].set(
        w3.astype(jnp.float32))                                  # (64, 128)  f32
    b3p = jnp.zeros((1, OUT_PAD), jnp.float32).at[:, :OUT_DIM].set(
        b3.reshape(1, OUT_DIM).astype(jnp.float32))
    return (w1p, b1f, w2f, b2f, w3p, b3p)


def _round_up(v, m):
    return ((v + m - 1) // m) * m


def _choose_tile(B, tb):
    """Pick batch tile TB (multiple of 16) and padded batch B_pad."""
    tb = max(16, min(int(tb), _MAX_TB))
    B16 = _round_up(B, 16)
    TB = min(_round_up(tb, 16), B16)
    n = pl.cdiv(B16, TB)
    # v7x megacore: ("parallel",) shards batch tiles across the 2 TensorCores;
    # an odd grid length (>1) leaves them imbalanced -- prefer an even split.
    if n > 1 and n % 2 == 1:
        TB2 = _round_up(pl.cdiv(B16, n + 1), 16)
        if pl.cdiv(B16, TB2) % 2 == 0:
            TB = TB2
            n = pl.cdiv(B16, TB)
    return TB, n * TB


def mlp_forward(x, prepared_params, *, tb=2048):
    """x: anything reshapeable to (-1, 784), like torch's x.view(-1, 784)."""
    w1p, b1f, w2f, b2f, w3p, b3p = prepared_params

    x2d = x.reshape(-1, IN_DIM)          # no dtype cast, no lane padding on host
    B = x2d.shape[0]
    TB, B_pad = _choose_tile(B, tb)
    if B_pad != B:                        # only pad the ragged batch tail
        x2d = jnp.pad(x2d, ((0, B_pad - B), (0, 0)))
    grid = (B_pad // TB,)

    # Weights/biases: constant index map -> fetched once, resident in VMEM
    # across all batch tiles (block index never changes).
    def resident(a):
        return pl.BlockSpec(a.shape, lambda i: (0,) * a.ndim)

    flops = 2 * B_pad * (IN_DIM * H1 + H1 * H2 + H2 * OUT_PAD)
    bytes_accessed = (B_pad * IN_DIM * x2d.dtype.itemsize      # x read
                      + B_pad * OUT_PAD * 2                    # bf16 out write
                      + IN_DIM * H1 * 2                        # w1 (bf16)
                      + (H1 * H2 + H2 * OUT_PAD) * 4           # w2, w3 (f32)
                      + (H1 + H2 + OUT_PAD) * 4)               # biases (f32)

    out = pl.pallas_call(
        mlp_kernel,
        out_shape=jax.ShapeDtypeStruct((B_pad, OUT_PAD), jnp.bfloat16),
        grid=grid,
        in_specs=[
            # x: batch-tiled; last dim 784 == full array dim (legal, Mosaic
            # pads lanes internally for free -- no 784->896 HBM padding).
            pl.BlockSpec((TB, IN_DIM), lambda i: (i, 0)),
            resident(w1p), resident(b1f),
            resident(w2f), resident(b2f),
            resident(w3p), resident(b3p),
        ],
        out_specs=pl.BlockSpec((TB, OUT_PAD), lambda i: (i, 0)),
        compiler_params=pltpu.CompilerParams(
            dimension_semantics=("parallel",)),   # megacore sharding on v7x
        cost_estimate=pl.CostEstimate(
            flops=flops, transcendentals=0, bytes_accessed=bytes_accessed),
    )(x2d, w1p, b1f, w2f, b2f, w3p, b3p)

    # Undo batch/lane padding. (Callers that can consume the padded bf16
    # (B_pad, 128) block directly should do so to skip this extra HBM pass.)
    return out[:B, :OUT_DIM]


def init_params(key):
    """Deterministic init matching nn.Linear shapes (weights stored transposed)."""
    k1, k2, k3, k4, k5, k6 = jax.random.split(key, 6)

    def linear_init(kw, kb, fan_in, fan_out):
        # PyTorch default: U(-1/sqrt(fan_in), 1/sqrt(fan_in))
        bound = 1.0 / jnp.sqrt(fan_in)
        w = jax.random.uniform(kw, (fan_in, fan_out), jnp.float32, -bound, bound)
        b = jax.random.uniform(kb, (1, fan_out), jnp.float32, -bound, bound)
        return w, b

    w1, b1 = linear_init(k1, k2, IN_DIM, H1)
    w2, b2 = linear_init(k3, k4, H1, H2)
    w3, b3 = linear_init(k5, k6, H2, OUT_DIM)
    return w1, b1, w2, b2, w3, b3


def _reference(x, params):
    xr = x.reshape(-1, IN_DIM)
    w1, b1, w2, b2, w3, b3 = params
    h1 = jnp.maximum(xr @ w1 + b1, 0.0)
    h2 = jnp.maximum(h1 @ w2 + b2, 0.0)
    return h2 @ w3 + b3


if __name__ == "__main__":
    key = jax.random.PRNGKey(0)
    kx, kx2, kp = jax.random.split(key, 3)
    params = init_params(kp)
    prepped = prepare_params(*params)      # one-time weight prep (hoisted)

    # Small MNIST-like batch: (B, 1, 28, 28) -> view(-1, 784)
    B = 8
    x = jax.random.normal(kx, (B, 1, 28, 28), dtype=jnp.float32)
    out = jax.block_until_ready(mlp_forward(x, prepped))
    ref = _reference(x, params)
    assert out.shape == (B, OUT_DIM)
    # bf16 x/w1 on the MXU + bf16 output -> relaxed tolerance vs f32 ref.
    assert jnp.allclose(out.astype(jnp.float32), ref, atol=5e-2, rtol=5e-2)

    # Exercise multi-tile grid + ragged batch tail with a tiny tile size.
    B2 = 20
    x2 = jax.random.normal(kx2, (B2, 1, 28, 28), dtype=jnp.float32)
    out2 = jax.block_until_ready(mlp_forward(x2, prepped, tb=16))
    ref2 = _reference(x2, params)
    assert out2.shape == (B2, OUT_DIM)
    assert jnp.allclose(out2.astype(jnp.float32), ref2, atol=5e-2, rtol=5e-2)

    print("KERNEL_OK")
</pallas_src>

<mosaic_0001>
module attributes {stable_mosaic.version = 11 : i64} {
  func.func @mlp_kernel(%arg0: i32, %arg1: memref<16x784xf32, #tpu.memory_space<vmem>>, %arg2: memref<784x128xbf16, #tpu.memory_space<vmem>>, %arg3: memref<1x128xf32, #tpu.memory_space<vmem>>, %arg4: memref<128x64xf32, #tpu.memory_space<vmem>>, %arg5: memref<1x64xf32, #tpu.memory_space<vmem>>, %arg6: memref<64x128xf32, #tpu.memory_space<vmem>>, %arg7: memref<1x128xf32, #tpu.memory_space<vmem>>, %arg8: memref<16x128xbf16, #tpu.memory_space<vmem>>) attributes {dimension_semantics = [#tpu.dimension_semantics<parallel>], iteration_bounds = array<i64: 1>, scalar_prefetch = 0 : i64, scratch_operands = 0 : i64, tpu.core_type = #tpu.core_type<tc>, window_params = [{transform_indices = @transform_0, window_bounds = array<i64: 16, 784>}, {pipeline_mode = #tpu.pipeline_mode<synchronous>, transform_indices = @transform_1, window_bounds = array<i64: 784, 128>}, {pipeline_mode = #tpu.pipeline_mode<synchronous>, transform_indices = @transform_2, window_bounds = array<i64: 1, 128>}, {pipeline_mode = #tpu.pipeline_mode<synchronous>, transform_indices = @transform_3, window_bounds = array<i64: 128, 64>}, {pipeline_mode = #tpu.pipeline_mode<synchronous>, transform_indices = @transform_4, window_bounds = array<i64: 1, 64>}, {pipeline_mode = #tpu.pipeline_mode<synchronous>, transform_indices = @transform_5, window_bounds = array<i64: 64, 128>}, {pipeline_mode = #tpu.pipeline_mode<synchronous>, transform_indices = @transform_6, window_bounds = array<i64: 1, 128>}, {transform_indices = @transform_7, window_bounds = array<i64: 16, 128>}]} {
    %c0 = arith.constant 0 : index
    %c0_0 = arith.constant 0 : index
    %0 = vector.load %arg1[%c0, %c0_0] : memref<16x784xf32, #tpu.memory_space<vmem>>, vector<16x784xf32>
    %1 = arith.truncf %0 : vector<16x784xf32> to vector<16x784xbf16>
    %c0_1 = arith.constant 0 : index
    %c0_2 = arith.constant 0 : index
    %2 = vector.load %arg2[%c0_1, %c0_2] : memref<784x128xbf16, #tpu.memory_space<vmem>>, vector<784x128xbf16>
    %cst = arith.constant dense<0.000000e+00> : vector<16x128xf32>
    %3 = tpu.matmul %1, %2, %cst {dimension_numbers = #tpu.dot_dimension_numbers<[1], [0], [0], [1], [0, 0, 1, 1], [], []>} : vector<16x784xbf16>, vector<784x128xbf16>, vector<16x128xf32> -> vector<16x128xf32>
    %c0_3 = arith.constant 0 : index
    %c0_4 = arith.constant 0 : index
    %4 = vector.load %arg3[%c0_3, %c0_4] : memref<1x128xf32, #tpu.memory_space<vmem>>, vector<1x128xf32>
    %5 = vector.broadcast %4 : vector<1x128xf32> to vector<16x128xf32>
    %6 = arith.addf %3, %5 : vector<16x128xf32>
    %cst_5 = arith.constant 0.000000e+00 : f32
    %7 = vector.broadcast %cst_5 : f32 to vector<16x128xf32>
    %8 = arith.maximumf %6, %7 : vector<16x128xf32>
    %c0_6 = arith.constant 0 : index
    %c0_7 = arith.constant 0 : index
    %9 = vector.load %arg4[%c0_6, %c0_7] : memref<128x64xf32, #tpu.memory_space<vmem>>, vector<128x64xf32>
    %cst_8 = arith.constant dense<0.000000e+00> : vector<16x64xf32>
    %10 = tpu.matmul %8, %9, %cst_8 {dimension_numbers = #tpu.dot_dimension_numbers<[1], [0], [0], [1], [0, 0, 1, 1], [], []>} : vector<16x128xf32>, vector<128x64xf32>, vector<16x64xf32> -> vector<16x64xf32>
    %c0_9 = arith.constant 0 : index
    %c0_10 = arith.constant 0 : index
    %11 = vector.load %arg5[%c0_9, %c0_10] : memref<1x64xf32, #tpu.memory_space<vmem>>, vector<1x64xf32>
    %12 = vector.broadcast %11 : vector<1x64xf32> to vector<16x64xf32>
    %13 = arith.addf %10, %12 : vector<16x64xf32>
    %cst_11 = arith.constant 0.000000e+00 : f32
    %14 = vector.broadcast %cst_11 : f32 to vector<16x64xf32>
    %15 = arith.maximumf %13, %14 : vector<16x64xf32>
    %c0_12 = arith.constant 0 : index
    %c0_13 = arith.constant 0 : index
    %16 = vector.load %arg6[%c0_12, %c0_13] : memref<64x128xf32, #tpu.memory_space<vmem>>, vector<64x128xf32>
    %cst_14 = arith.constant dense<0.000000e+00> : vector<16x128xf32>
    %17 = tpu.matmul %15, %16, %cst_14 {dimension_numbers = #tpu.dot_dimension_numbers<[1], [0], [0], [1], [0, 0, 1, 1], [], []>} : vector<16x64xf32>, vector<64x128xf32>, vector<16x128xf32> -> vector<16x128xf32>
    %c0_15 = arith.constant 0 : index
    %c0_16 = arith.constant 0 : index
    %18 = vector.load %arg7[%c0_15, %c0_16] : memref<1x128xf32, #tpu.memory_space<vmem>>, vector<1x128xf32>
    %19 = vector.broadcast %18 : vector<1x128xf32> to vector<16x128xf32>
    %20 = arith.addf %17, %19 : vector<16x128xf32>
    %21 = arith.truncf %20 : vector<16x128xf32> to vector<16x128xbf16>
    %c0_17 = arith.constant 0 : index
    %c0_18 = arith.constant 0 : index
    %22 = vector.load %arg8[%c0_17, %c0_18] : memref<16x128xbf16, #tpu.memory_space<vmem>>, vector<16x128xbf16>
    tpu.vector_store %arg8[%c0_17, %c0_18], %21 {strides = array<i32>} : memref<16x128xbf16, #tpu.memory_space<vmem>>, vector<16x128xbf16>,
    return
  }
  func.func @transform_0(%arg0: i32) -> (i32, i32) {
    %c0_i32 = arith.constant 0 : i32
    %c0_i32_0 = arith.constant 0 : i32
    return %arg0, %c0_i32 : i32, i32
  }
  func.func @transform_1(%arg0: i32) -> (i32, i32) {
    %c0_i32 = arith.constant 0 : i32
    %c0_i32_0 = arith.constant 0 : i32
    %c0_i32_1 = arith.constant 0 : i32
    return %c0_i32, %c0_i32_0 : i32, i32
  }
  func.func @transform_2(%arg0: i32) -> (i32, i32) {
    %c0_i32 = arith.constant 0 : i32
    %c0_i32_0 = arith.constant 0 : i32
    %c0_i32_1 = arith.constant 0 : i32
    return %c0_i32, %c0_i32_0 : i32, i32
  }
  func.func @transform_3(%arg0: i32) -> (i32, i32) {
    %c0_i32 = arith.constant 0 : i32
    %c0_i32_0 = arith.constant 0 : i32
    %c0_i32_1 = arith.constant 0 : i32
    return %c0_i32, %c0_i32_0 : i32, i32
  }
  func.func @transform_4(%arg0: i32) -> (i32, i32) {
    %c0_i32 = arith.constant 0 : i32
    %c0_i32_0 = arith.constant 0 : i32
    %c0_i32_1 = arith.constant 0 : i32
    return %c0_i32, %c0_i32_0 : i32, i32
  }
  func.func @transform_5(%arg0: i32) -> (i32, i32) {
    %c0_i32 = arith.constant 0 : i32
    %c0_i32_0 = arith.constant 0 : i32
    %c0_i32_1 = arith.constant 0 : i32
    return %c0_i32, %c0_i32_0 : i32, i32
  }
  func.func @transform_6(%arg0: i32) -> (i32, i32) {
    %c0_i32 = arith.constant 0 : i32
    %c0_i32_0 = arith.constant 0 : i32
    %c0_i32_1 = arith.constant 0 : i32
    return %c0_i32, %c0_i32_0 : i32, i32
  }
  func.func @transform_7(%arg0: i32) -> (i32, i32) {
    %c0_i32 = arith.constant 0 : i32
    %c0_i32_0 = arith.constant 0 : i32
    return %arg0, %c0_i32 : i32, i32
  }
}

</mosaic_0001>

<llo_original>
// kernel: tpu_custom_call.1
$region0: #{tpu_custom_call.1}
  #allocation0 [shape = 'u32[]', space=smem, size = 0x4, offset = 0x4, fixed_abs, tag = 'smem constant byte address 0x4 - core index']
  #allocation1 [shape = 'u32[144,128]{1,0:T(1,128)}', space=vmem, size = 0x12000, scoped, tag = 'internal scratch']
  %s0 = inlined_call_operand.vmem [shape: f32[16,784], index: 0, kind: input, shape index: {}]
  %s1 = inlined_call_operand.hbm [shape: bf16[784,128], index: 1, kind: input, shape index: {}]
  %s2 = inlined_call_operand.vmem [shape: f32[1,128], index: 2, kind: input, shape index: {}]
  %s3 = inlined_call_operand.vmem [shape: f32[128,64], index: 3, kind: input, shape index: {}]
  %s4 = inlined_call_operand.vmem [shape: f32[1,64], index: 4, kind: input, shape index: {}]
  %s5 = inlined_call_operand.vmem [shape: f32[64,128], index: 5, kind: input, shape index: {}]
  %s6 = inlined_call_operand.vmem [shape: f32[1,128], index: 6, kind: input, shape index: {}]
  %s7 = inlined_call_operand.hbm [shape: bf16[16,128], index: 7, kind: output, shape index: {}]
  %s8 = sld [smem:[#allocation0]]
  $region42: #{tpu_custom_call.1} parent=0
    _
  %s10 = ssub.s32 1, %s8
  %s11 = scalar_select 0, %s10, %s8
  $region1: #{tpu_custom_call.1} parent=0
    #allocation2 [shape = 'u8[200704]{0}', space=vmem, size = 0x31000, scoped, tag = 'input window, operand 1, single buffered']
    #allocation3 [shape = 's32[1]{0}', space=sflag, size = 0x4, scoped, tag = 'scoped memory for tpu_custom_call.1']
    #allocation4 [shape = 's32[1]{0}', space=sflag, size = 0x4, scoped, tag = 'scoped memory for tpu_custom_call.1']
    #allocation5 [shape = 'u8[4096]{0}', space=vmem, size = 0x1000, scoped, tag = 'output window, operand 0, single buffered']
    %12 = vsyncpa [#allocation3], 0
    %13 = vsyncpa [#allocation4], 0
    // Predicated region
    $region2: #{tpu_custom_call.1} parent=1 // pred_check
      _
    $region3: #{tpu_custom_call.1} parent=1 // pred_check_branch
      %15 = sbr.rel (0) target = $region5
    $region4: #{tpu_custom_call.1} parent=1 // pred_region
      _
    $region5: #{tpu_custom_call.1} parent=1 // pred_fallthru
      _
    // Predicated region
    $region6: #{tpu_custom_call.1} parent=1 // pred_check
      _
    $region7: #{tpu_custom_call.1} parent=1 // pred_check_branch
      %17 = sbr.rel (0) target = $region9
    $region8: #{tpu_custom_call.1} parent=1 // pred_region
      %s19 = ssub.s32 6272, 6272
      %20 = vsyncadd [#allocation3], %s19
      %s21 = sshll.u32 [#allocation2], 4
      %s22 = int_to_ptr.vmem [resolvable:$true] %s21
      %27 = dma.hbm_to_vmem [thread:$0]  %s1, 6272, %s22, [#allocation3], 64, 64, 4
    $region9: #{tpu_custom_call.1} parent=1 // pred_fallthru
      _
    // Predicated region
    $region10: #{tpu_custom_call.1} parent=1 // pred_check
      _
    $region11: #{tpu_custom_call.1} parent=1 // pred_check_branch
      %29 = sbr.rel (0) target = $region13
    $region12: #{tpu_custom_call.1} parent=1 // pred_region
      _
    $region13: #{tpu_custom_call.1} parent=1 // pred_fallthru
      _
    // Predicated region
    $region14: #{tpu_custom_call.1} parent=1 // pred_check
      _
    $region15: #{tpu_custom_call.1} parent=1 // pred_check_branch
      %31 = sbr.rel (0) target = $region17
    $region16: #{tpu_custom_call.1} parent=1 // pred_region
      _
    $region17: #{tpu_custom_call.1} parent=1 // pred_fallthru
      _
    // Predicated region
    $region18: #{tpu_custom_call.1} parent=1 // pred_check
      _
    $region19: #{tpu_custom_call.1} parent=1 // pred_check_branch
      %33 = sbr.rel (0) target = $region21
    $region20: #{tpu_custom_call.1} parent=1 // pred_region
      _
    $region21: #{tpu_custom_call.1} parent=1 // pred_fallthru
      _
    // Predicated region
    $region22: #{tpu_custom_call.1} parent=1 // pred_check
      _
    $region23: #{tpu_custom_call.1} parent=1 // pred_check_branch
      %35 = sbr.rel (0) target = $region25
    $region24: #{tpu_custom_call.1} parent=1 // pred_region
      _
    $region25: #{tpu_custom_call.1} parent=1 // pred_fallthru
      _
    // Predicated region
    $region26: #{tpu_custom_call.1} parent=1 // pred_check
      _
    $region27: #{tpu_custom_call.1} parent=1 // pred_check_branch
      %37 = sbr.rel (0) target = $region29
    $region28: #{tpu_custom_call.1} parent=1 // pred_region
      _
    $region29: #{tpu_custom_call.1} parent=1 // pred_fallthru
      _
    // Predicated region
    $region30: #{tpu_custom_call.1} parent=1 // pred_check
      _
    $region31: #{tpu_custom_call.1} parent=1 // pred_check_branch
      %39 = sbr.rel (0) target = $region33
    $region32: #{tpu_custom_call.1} parent=1 // pred_region
      %40 = dma.done [#allocation3], 6272
    $region33: #{tpu_custom_call.1} parent=1 // pred_fallthru
      _
    %v42 = vld [vmem:[%s0] sm:$0xff]
    %v43 = vld [vmem:[%s0 + $0x8] sm:$0xff]
    %v44 = vld [vmem:[%s0 + $0x10] sm:$0xff]
    %v45 = vld [vmem:[%s0 + $0x18] sm:$0xff]
    %v46 = vld [vmem:[%s0 + $0x20] sm:$0xff]
    %v47 = vld [vmem:[%s0 + $0x28] sm:$0xff]
    %v48 = vld [vmem:[%s0 + $0x30] sm:$0xff]
    %v49 = vld [vmem:[%s0 + $0x38] sm:$0xff]
    %v50 = vld [vmem:[%s0 + $0x40] sm:$0xff]
    %v51 = vld [vmem:[%s0 + $0x48] sm:$0xff]
    %v52 = vld [vmem:[%s0 + $0x50] sm:$0xff]
    %v53 = vld [vmem:[%s0 + $0x58] sm:$0xff]
    %v54 = vld [vmem:[%s0 + $0x60] sm:$0xff]
    %v55 = vld [vmem:[%s0 + $0x68] sm:$0xff]
    %v56 = vpack.c.bf16 %v49, %v42
    %v57 = vpack.c.bf16 %v50, %v43
    %v58 = vpack.c.bf16 %v51, %v44
    %v59 = vpack.c.bf16 %v52, %v45
    %v60 = vpack.c.bf16 %v53, %v46
    %v61 = vpack.c.bf16 %v54, %v47
    %v62 = vpack.c.bf16 %v55, %v48
    %v63 = vld [vmem:[#allocation2] sm:$0xf]
    %v64 = vld [vmem:[#allocation2 + $0x4] sm:$0xf]
    %v65 = vld [vmem:[#allocation2 + $0x8] sm:$0xf]
    %v66 = vld [vmem:[#allocation2 + $0xc] sm:$0xf]
    %v67 = vld [vmem:[#allocation2 + $0x10] sm:$0xf]
    %v68 = vld [vmem:[#allocation2 + $0x14] sm:$0xf]
    %v69 = vld [vmem:[#allocation2 + $0x18] sm:$0xf]
    %v70 = vld [vmem:[#allocation2 + $0x1c] sm:$0xf]
    %v71 = vld [vmem:[#allocation2 + $0x20] sm:$0xf]
    %v72 = vld [vmem:[#allocation2 + $0x24] sm:$0xf]
    %v73 = vld [vmem:[#allocation2 + $0x28] sm:$0xf]
    %v74 = vld [vmem:[#allocation2 + $0x2c] sm:$0xf]
    %v75 = vld [vmem:[#allocation2 + $0x30] sm:$0xf]
    %v76 = vld [vmem:[#allocation2 + $0x34] sm:$0xf]
    %v77 = vld [vmem:[#allocation2 + $0x38] sm:$0xf]
    %v78 = vld [vmem:[#allocation2 + $0x3c] sm:$0xf]
    %v79 = vld [vmem:[#allocation2 + $0x40] sm:$0xf]
    %v80 = vld [vmem:[#allocation2 + $0x44] sm:$0xf]
    %v81 = vld [vmem:[#allocation2 + $0x48] sm:$0xf]
    %v82 = vld [vmem:[#allocation2 + $0x4c] sm:$0xf]
    %v83 = vld [vmem:[#allocation2 + $0x50] sm:$0xf]
    %v84 = vld [vmem:[#allocation2 + $0x54] sm:$0xf]
    %v85 = vld [vmem:[#allocation2 + $0x58] sm:$0xf]
    %v86 = vld [vmem:[#allocation2 + $0x5c] sm:$0xf]
    %v87 = vld [vmem:[#allocation2 + $0x60] sm:$0xf]
    %v88 = vld [vmem:[#allocation2 + $0x64] sm:$0xf]
    %v89 = vld [vmem:[#allocation2 + $0x68] sm:$0xf]
    %v90 = vld [vmem:[#allocation2 + $0x6c] sm:$0xf]
    %v91 = vld [vmem:[#allocation2 + $0x70] sm:$0xf]
    %v92 = vld [vmem:[#allocation2 + $0x74] sm:$0xf]
    %v93 = vld [vmem:[#allocation2 + $0x78] sm:$0xf]
    %v94 = vld [vmem:[#allocation2 + $0x7c] sm:$0xf]
    %v95 = vld [vmem:[#allocation2 + $0x80] sm:$0xf]
    %v96 = vld [vmem:[#allocation2 + $0x84] sm:$0xf]
    %v97 = vld [vmem:[#allocation2 + $0x88] sm:$0xf]
    %v98 = vld [vmem:[#allocation2 + $0x8c] sm:$0xf]
    %v99 = vld [vmem:[#allocation2 + $0x90] sm:$0xf]
    %v100 = vld [vmem:[#allocation2 + $0x94] sm:$0xf]
    %v101 = vld [vmem:[#allocation2 + $0x98] sm:$0xf]
    %v102 = vld [vmem:[#allocation2 + $0x9c] sm:$0xf]
    %v103 = vld [vmem:[#allocation2 + $0xa0] sm:$0xf]
    %v104 = vld [vmem:[#allocation2 + $0xa4] sm:$0xf]
    %v105 = vld [vmem:[#allocation2 + $0xa8] sm:$0xf]
    %v106 = vld [vmem:[#allocation2 + $0xac] sm:$0xf]
    %v107 = vld [vmem:[#allocation2 + $0xb0] sm:$0xf]
    %v108 = vld [vmem:[#allocation2 + $0xb4] sm:$0xf]
    %v109 = vld [vmem:[#allocation2 + $0xb8] sm:$0xf]
    %v110 = vld [vmem:[#allocation2 + $0xbc] sm:$0xf]
    %v111 = vld [vmem:[#allocation2 + $0xc0] sm:$0xf]
    %v112 = vld [vmem:[#allocation2 + $0xc4] sm:$0xf]
    %v113 = vld [vmem:[#allocation2 + $0xc8] sm:$0xf]
    %v114 = vld [vmem:[#allocation2 + $0xcc] sm:$0xf]
    %v115 = vld [vmem:[#allocation2 + $0xd0] sm:$0xf]
    %v116 = vld [vmem:[#allocation2 + $0xd4] sm:$0xf]
    %v117 = vld [vmem:[#allocation2 + $0xd8] sm:$0xf]
    %v118 = vld [vmem:[#allocation2 + $0xdc] sm:$0xf]
    %v119 = vld [vmem:[#allocation2 + $0xe0] sm:$0xf]
    %v120 = vld [vmem:[#allocation2 + $0xe4] sm:$0xf]
    %v121 = vld [vmem:[#allocation2 + $0xe8] sm:$0xf]
    %v122 = vld [vmem:[#allocation2 + $0xec] sm:$0xf]
    %v123 = vld [vmem:[#allocation2 + $0xf0] sm:$0xf]
    %v124 = vld [vmem:[#allocation2 + $0xf4] sm:$0xf]
    %v125 = vld [vmem:[#allocation2 + $0xf8] sm:$0xf]
    %v126 = vld [vmem:[#allocation2 + $0xfc] sm:$0xf]
    %v127 = vld [vmem:[#allocation2 + $0x100] sm:$0xf]
    %v128 = vld [vmem:[#allocation2 + $0x104] sm:$0xf]
    %v129 = vld [vmem:[#allocation2 + $0x108] sm:$0xf]
    %v130 = vld [vmem:[#allocation2 + $0x10c] sm:$0xf]
    %v131 = vld [vmem:[#allocation2 + $0x110] sm:$0xf]
    %v132 = vld [vmem:[#allocation2 + $0x114] sm:$0xf]
    %v133 = vld [vmem:[#allocation2 + $0x118] sm:$0xf]
    %v134 = vld [vmem:[#allocation2 + $0x11c] sm:$0xf]
    %v135 = vld [vmem:[#allocation2 + $0x120] sm:$0xf]
    %v136 = vld [vmem:[#allocation2 + $0x124] sm:$0xf]
    %v137 = vld [vmem:[#allocation2 + $0x128] sm:$0xf]
    %v138 = vld [vmem:[#allocation2 + $0x12c] sm:$0xf]
    %v139 = vld [vmem:[#allocation2 + $0x130] sm:$0xf]
    %v140 = vld [vmem:[#allocation2 + $0x134] sm:$0xf]
    %v141 = vld [vmem:[#allocation2 + $0x138] sm:$0xf]
    %v142 = vld [vmem:[#allocation2 + $0x13c] sm:$0xf]
    %v143 = vld [vmem:[#allocation2 + $0x140] sm:$0xf]
    %v144 = vld [vmem:[#allocation2 + $0x144] sm:$0xf]
    %v145 = vld [vmem:[#allocation2 + $0x148] sm:$0xf]
    %v146 = vld [vmem:[#allocation2 + $0x14c] sm:$0xf]
    %v147 = vld [vmem:[#allocation2 + $0x150] sm:$0xf]
    %v148 = vld [vmem:[#allocation2 + $0x154] sm:$0xf]
    %v149 = vld [vmem:[#allocation2 + $0x158] sm:$0xf]
    %v150 = vld [vmem:[#allocation2 + $0x15c] sm:$0xf]
    %v151 = vld [vmem:[#allocation2 + $0x160] sm:$0xf]
    %v152 = vld [vmem:[#allocation2 + $0x164] sm:$0xf]
    %v153 = vld [vmem:[#allocation2 + $0x168] sm:$0xf]
    %v154 = vld [vmem:[#allocation2 + $0x16c] sm:$0xf]
    %v155 = vld [vmem:[#allocation2 + $0x170] sm:$0xf]
    %v156 = vld [vmem:[#allocation2 + $0x174] sm:$0xf]
    %v157 = vld [vmem:[#allocation2 + $0x178] sm:$0xf]
    %v158 = vld [vmem:[#allocation2 + $0x17c] sm:$0xf]
    %v159 = vld [vmem:[#allocation2 + $0x180] sm:$0xf]
    %v160 = vld [vmem:[#allocation2 + $0x184] sm:$0xf]
    %v161 = vld [vmem:[%s2] sm:$0x1]
    %v163 = vlaneseq
    %v164 = vshrl.u32 %v163, 7
    %v165 = vsub.s32 0, %v164
    %v166 = vrot.slane %v161, %v165
    %v266 = vunpack.c.l.b16 %v63
    %v267 = vunpack.c.l.b16 %v64
    %v268 = vunpack.c.l.b16 %v65
    %v269 = vunpack.c.l.b16 %v66
    %v270 = vunpack.c.l.b16 %v67
    %v271 = vunpack.c.l.b16 %v68
    %v272 = vunpack.c.l.b16 %v69
    %v273 = vunpack.c.l.b16 %v70
    %v274 = vunpack.c.l.b16 %v71
    %v275 = vunpack.c.l.b16 %v72
    %v276 = vunpack.c.l.b16 %v73
    %v277 = vunpack.c.l.b16 %v74
    %v278 = vunpack.c.l.b16 %v75
    %v279 = vunpack.c.l.b16 %v76
    %v280 = vunpack.c.l.b16 %v77
    %v281 = vunpack.c.l.b16 %v78
    %v282 = vunpack.c.l.b16 %v79
    %v283 = vunpack.c.l.b16 %v80
    %v284 = vunpack.c.l.b16 %v81
    %v285 = vunpack.c.l.b16 %v82
    %v286 = vunpack.c.l.b16 %v83
    %v287 = vunpack.c.l.b16 %v84
    %v288 = vunpack.c.l.b16 %v85
    %v289 = vunpack.c.l.b16 %v86
    %v290 = vunpack.c.l.b16 %v87
    %v291 = vunpack.c.l.b16 %v88
    %v292 = vunpack.c.l.b16 %v89
    %v293 = vunpack.c.l.b16 %v90
    %v294 = vunpack.c.l.b16 %v91
    %v295 = vunpack.c.l.b16 %v92
    %v296 = vunpack.c.l.b16 %v93
    %v297 = vunpack.c.l.b16 %v94
    %v298 = vunpack.c.l.b16 %v95
    %v299 = vunpack.c.l.b16 %v96
    %v300 = vunpack.c.l.b16 %v97
    %v301 = vunpack.c.l.b16 %v98
    %v302 = vunpack.c.l.b16 %v99
    %v303 = vunpack.c.l.b16 %v100
    %v304 = vunpack.c.l.b16 %v101
    %v305 = vunpack.c.l.b16 %v102
    %v306 = vunpack.c.l.b16 %v103
    %v307 = vunpack.c.l.b16 %v104
    %v308 = vunpack.c.l.b16 %v105
    %v309 = vunpack.c.l.b16 %v106
    %v310 = vunpack.c.l.b16 %v107
    %v311 = vunpack.c.l.b16 %v108
    %v312 = vunpack.c.l.b16 %v109
    %v313 = vunpack.c.l.b16 %v110
    %v314 = vunpack.c.l.b16 %v111
    %v315 = vunpack.c.l.b16 %v112
    %v316 = vunpack.c.l.b16 %v113
    %v317 = vunpack.c.l.b16 %v114
    %v318 = vunpack.c.l.b16 %v115
    %v319 = vunpack.c.l.b16 %v116
    %v320 = vunpack.c.l.b16 %v117
    %v321 = vunpack.c.l.b16 %v118
    %v322 = vunpack.c.l.b16 %v119
    %v323 = vunpack.c.l.b16 %v120
    %v324 = vunpack.c.l.b16 %v121
    %v325 = vunpack.c.l.b16 %v122
    %v326 = vunpack.c.l.b16 %v123
    %v327 = vunpack.c.l.b16 %v124
    %v328 = vunpack.c.l.b16 %v125
    %v329 = vunpack.c.l.b16 %v126
    %v330 = vunpack.c.l.b16 %v127
    %v331 = vunpack.c.l.b16 %v128
    %v332 = vunpack.c.l.b16 %v129
    %v333 = vunpack.c.l.b16 %v130
    %v334 = vunpack.c.l.b16 %v131
    %v335 = vunpack.c.l.b16 %v132
    %v336 = vunpack.c.l.b16 %v133
    %v337 = vunpack.c.l.b16 %v134
    %v338 = vunpack.c.l.b16 %v135
    %v339 = vunpack.c.l.b16 %v136
    %v340 = vunpack.c.l.b16 %v137
    %v341 = vunpack.c.l.b16 %v138
    %v342 = vunpack.c.l.b16 %v139
    %v343 = vunpack.c.l.b16 %v140
    %v344 = vunpack.c.l.b16 %v141
    %v345 = vunpack.c.l.b16 %v142
    %v346 = vunpack.c.l.b16 %v143
    %v347 = vunpack.c.l.b16 %v144
    %v348 = vunpack.c.l.b16 %v145
    %v349 = vunpack.c.l.b16 %v146
    %v350 = vunpack.c.l.b16 %v147
    %v351 = vunpack.c.l.b16 %v148
    %v352 = vunpack.c.l.b16 %v149
    %v353 = vunpack.c.l.b16 %v150
    %v354 = vunpack.c.l.b16 %v151
    %v355 = vunpack.c.l.b16 %v152
    %v356 = vunpack.c.l.b16 %v153
    %v357 = vunpack.c.l.b16 %v154
    %v358 = vunpack.c.l.b16 %v155
    %v359 = vunpack.c.l.b16 %v156
    %v360 = vunpack.c.l.b16 %v157
    %v361 = vunpack.c.l.b16 %v158
    %v362 = vunpack.c.l.b16 %v159
    %v363 = vunpack.c.l.b16 %v160
    %v364 = vpack.c.b16 %v267, %v266
    %v365 = vpack.c.b16 %v269, %v268
    %v366 = vpack.c.b16 %v271, %v270
    %v367 = vpack.c.b16 %v273, %v272
    %v368 = vpack.c.b16 %v275, %v274
    %v369 = vpack.c.b16 %v277, %v276
    %v370 = vpack.c.b16 %v279, %v278
    %v371 = vpack.c.b16 %v281, %v280
    %v372 = vpack.c.b16 %v283, %v282
    %v373 = vpack.c.b16 %v285, %v284
    %v374 = vpack.c.b16 %v287, %v286
    %v375 = vpack.c.b16 %v289, %v288
    %v376 = vpack.c.b16 %v291, %v290
    %v377 = vpack.c.b16 %v293, %v292
    %v378 = vpack.c.b16 %v295, %v294
    %v379 = vpack.c.b16 %v297, %v296
    %v380 = vpack.c.b16 %v299, %v298
    %v381 = vpack.c.b16 %v301, %v300
    %v382 = vpack.c.b16 %v303, %v302
    %v383 = vpack.c.b16 %v305, %v304
    %v384 = vpack.c.b16 %v307, %v306
    %v385 = vpack.c.b16 %v309, %v308
    %v386 = vpack.c.b16 %v311, %v310
    %v387 = vpack.c.b16 %v313, %v312
    %v388 = vpack.c.b16 %v315, %v314
    %v389 = vpack.c.b16 %v317, %v316
    %v390 = vpack.c.b16 %v319, %v318
    %v391 = vpack.c.b16 %v321, %v320
    %v392 = vpack.c.b16 %v323, %v322
    %v393 = vpack.c.b16 %v325, %v324
    %v394 = vpack.c.b16 %v327, %v326
    %v395 = vpack.c.b16 %v329, %v328
    %v396 = vpack.c.b16 %v331, %v330
    %v397 = vpack.c.b16 %v333, %v332
    %v398 = vpack.c.b16 %v335, %v334
    %v399 = vpack.c.b16 %v337, %v336
    %v400 = vpack.c.b16 %v339, %v338
    %v401 = vpack.c.b16 %v341, %v340
    %v402 = vpack.c.b16 %v343, %v342
    %v403 = vpack.c.b16 %v345, %v344
    %v404 = vpack.c.b16 %v347, %v346
    %v405 = vpack.c.b16 %v349, %v348
    %v406 = vpack.c.b16 %v351, %v350
    %v407 = vpack.c.b16 %v353, %v352
    %v408 = vpack.c.b16 %v355, %v354
    %v409 = vpack.c.b16 %v357, %v356
    %v410 = vpack.c.b16 %v359, %v358
    %v411 = vpack.c.b16 %v361, %v360
    %v412 = vpack.c.b16 %v363, %v362
    %vm462 = vcmask 130048
    %v464 = vsel %vm462, %v62, 0
    %466 = vmatprep.subr.bf16.mxu0 0
    %467 = vmatpush1.bf16.msra.mxu0 %v364
    %468 = vmatprep.subr.bf16.mxu0 0
    %469 = vmatpush1.bf16.msra.mxu0 %v365
    %470 = vmatprep.subr.bf16.mxu0 0
    %471 = vmatpush1.bf16.msra.mxu0 %v366
    %472 = vmatprep.subr.bf16.mxu0 0
    %473 = vmatpush1.bf16.msra.mxu0 %v367
    %474 = vmatprep.subr.bf16.mxu0 0
    %475 = vmatpush1.bf16.msra.mxu0 %v368
    %476 = vmatprep.subr.bf16.mxu0 0
    %477 = vmatpush1.bf16.msra.mxu0 %v369
    %478 = vmatprep.subr.bf16.mxu0 0
    %479 = vmatpush1.bf16.msra.mxu0 %v370
    %480 = vmatprep.subr.bf16.mxu0 0
    %481 = vmatpush1.bf16.msra.mxu0 %v371
    %482 = vmatprep.subr.bf16.mxu0 0
    %483 = vmatpush1.bf16.msra.mxu0 %v372
    %484 = vmatprep.subr.bf16.mxu0 0
    %485 = vmatpush1.bf16.msra.mxu0 %v373
    %486 = vmatprep.subr.bf16.mxu0 0
    %487 = vmatpush1.bf16.msra.mxu0 %v374
    %488 = vmatprep.subr.bf16.mxu0 0
    %489 = vmatpush1.bf16.msra.mxu0 %v375
    %490 = vmatprep.subr.bf16.mxu0 0
    %491 = vmatpush1.bf16.msra.mxu0 %v376
    %492 = vmatprep.subr.bf16.mxu0 0
    %493 = vmatpush1.bf16.msra.mxu0 %v377
    %494 = vmatprep.subr.bf16.mxu0 0
    %495 = vmatpush1.bf16.msra.mxu0 %v378
    %496 = vmatprep.subr.bf16.mxu0 0
    %497 = vmatpush1.bf16.msra.mxu0 %v379
    %498 = vmatprep.mubr.bf16.mxu0 %v57
    %499 = vmatmul.mubr.bf16.gmra.mrb[0].mxu0 %v56
    %v500 = vpop.f32.mrb[0].mxu0
    %v501 = vadd.f32 %v166, %v500
    %v502 = vpop.f32.mrb[0].mxu0
    %v503 = vpop.f32.mrb[0].mxu0
    %v504 = vadd.f32 %v166, %v503
    %v505 = vpop.f32.mrb[0].mxu0
    %506 = vdwg.mxu0
    %507 = vmatprep.subr.bf16.mxu0 0
    %508 = vmatpush1.bf16.msra.mxu0 %v380
    %509 = vmatprep.subr.bf16.mxu0 0
    %510 = vmatpush1.bf16.msra.mxu0 %v381
    %511 = vmatprep.subr.bf16.mxu0 0
    %512 = vmatpush1.bf16.msra.mxu0 %v382
    %513 = vmatprep.subr.bf16.mxu0 0
    %514 = vmatpush1.bf16.msra.mxu0 %v383
    %515 = vmatprep.subr.bf16.mxu0 0
    %516 = vmatpush1.bf16.msra.mxu0 %v384
    %517 = vmatprep.subr.bf16.mxu0 0
    %518 = vmatpush1.bf16.msra.mxu0 %v385
    %519 = vmatprep.subr.bf16.mxu0 0
    %520 = vmatpush1.bf16.msra.mxu0 %v386
    %521 = vmatprep.subr.bf16.mxu0 0
    %522 = vmatpush1.bf16.msra.mxu0 %v387
    %523 = vmatprep.subr.bf16.mxu0 0
    %524 = vmatpush1.bf16.msra.mxu0 %v388
    %525 = vmatprep.subr.bf16.mxu0 0
    %526 = vmatpush1.bf16.msra.mxu0 %v389
    %527 = vmatprep.subr.bf16.mxu0 0
    %528 = vmatpush1.bf16.msra.mxu0 %v390
    %529 = vmatprep.subr.bf16.mxu0 0
    %530 = vmatpush1.bf16.msra.mxu0 %v391
    %531 = vmatprep.subr.bf16.mxu0 0
    %532 = vmatpush1.bf16.msra.mxu0 %v392
    %533 = vmatprep.subr.bf16.mxu0 0
    %534 = vmatpush1.bf16.msra.mxu0 %v393
    %535 = vmatprep.subr.bf16.mxu0 0
    %536 = vmatpush1.bf16.msra.mxu0 %v394
    %537 = vmatprep.subr.bf16.mxu0 0
    %538 = vmatpush1.bf16.msra.mxu0 %v395
    %539 = vmatprep.mubr.bf16.mxu0 %v59
    %540 = vmatmul.mubr.bf16.gmra.mrb[0].mxu0 %v58
    %v541 = vpop.f32.mrb[0].mxu0
    %v542 = vadd.f32 %v501, %v541
    %v543 = vpop.f32.mrb[0].mxu0
    %v544 = vpop.f32.mrb[0].mxu0
    %v545 = vadd.f32 %v504, %v544
    %v546 = vpop.f32.mrb[0].mxu0
    %547 = vdwg.mxu0
    %548 = vmatprep.subr.bf16.mxu0 0
    %549 = vmatpush1.bf16.msra.mxu0 %v396
    %550 = vmatprep.subr.bf16.mxu0 0
    %551 = vmatpush1.bf16.msra.mxu0 %v397
    %552 = vmatprep.subr.bf16.mxu0 0
    %553 = vmatpush1.bf16.msra.mxu0 %v398
    %554 = vmatprep.subr.bf16.mxu0 0
    %555 = vmatpush1.bf16.msra.mxu0 %v399
    %556 = vmatprep.subr.bf16.mxu0 0
    %557 = vmatpush1.bf16.msra.mxu0 %v400
    %558 = vmatprep.subr.bf16.mxu0 0
    %559 = vmatpush1.bf16.msra.mxu0 %v401
    %560 = vmatprep.subr.bf16.mxu0 0
    %561 = vmatpush1.bf16.msra.mxu0 %v402
    %562 = vmatprep.subr.bf16.mxu0 0
    %563 = vmatpush1.bf16.msra.mxu0 %v403
    %564 = vmatprep.subr.bf16.mxu0 0
    %565 = vmatpush1.bf16.msra.mxu0 %v404
    %566 = vmatprep.subr.bf16.mxu0 0
    %567 = vmatpush1.bf16.msra.mxu0 %v405
    %568 = vmatprep.subr.bf16.mxu0 0
    %569 = vmatpush1.bf16.msra.mxu0 %v406
    %570 = vmatprep.subr.bf16.mxu0 0
    %571 = vmatpush1.bf16.msra.mxu0 %v407
    %572 = vmatprep.subr.bf16.mxu0 0
    %573 = vmatpush1.bf16.msra.mxu0 %v408
    %574 = vmatprep.subr.bf16.mxu0 0
    %575 = vmatpush1.bf16.msra.mxu0 %v409
    %576 = vmatprep.subr.bf16.mxu0 0
    %577 = vmatpush1.bf16.msra.mxu0 %v410
    %578 = vmatprep.subr.bf16.mxu0 0
    %579 = vmatpush1.bf16.msra.mxu0 %v411
    %580 = vmatprep.mubr.bf16.mxu0 %v61
    %581 = vmatmul.mubr.bf16.gmra.mrb[0].mxu0 %v60
    %v582 = vpop.f32.mrb[0].mxu0
    %v583 = vadd.f32 %v542, %v582
    %v584 = vpop.f32.mrb[0].mxu0
    %v585 = vpop.f32.mrb[0].mxu0
    %v586 = vadd.f32 %v545, %v585
    %v587 = vpop.f32.mrb[0].mxu0
    %588 = vdwg.mxu0
    %589 = vmatprep.subr.bf16.mxu0 0
    %590 = vmatpush1.bf16.msra.mxu0 %v412
    %591 = vmatprep.subr.bf16.mxu0 0
    %592 = vmatpush1.bf16.msra.mxu0 0
    %593 = vmatprep.subr.bf16.mxu0 0
    %594 = vmatpush1.bf16.msra.mxu0 0
    %595 = vmatprep.subr.bf16.mxu0 0
    %596 = vmatpush1.bf16.msra.mxu0 0
    %597 = vmatprep.subr.bf16.mxu0 0
    %598 = vmatpush1.bf16.msra.mxu0 0
    %599 = vmatprep.subr.bf16.mxu0 0
    %600 = vmatpush1.bf16.msra.mxu0 0
    %601 = vmatprep.subr.bf16.mxu0 0
    %602 = vmatpush1.bf16.msra.mxu0 0
    %603 = vmatprep.subr.bf16.mxu0 0
    %604 = vmatpush1.bf16.msra.mxu0 0
    %605 = vmatprep.subr.bf16.mxu0 0
    %606 = vmatpush1.bf16.msra.mxu0 0
    %607 = vmatprep.subr.bf16.mxu0 0
    %608 = vmatpush1.bf16.msra.mxu0 0
    %609 = vmatprep.subr.bf16.mxu0 0
    %610 = vmatpush1.bf16.msra.mxu0 0
    %611 = vmatprep.subr.bf16.mxu0 0
    %612 = vmatpush1.bf16.msra.mxu0 0
    %613 = vmatprep.subr.bf16.mxu0 0
    %614 = vmatpush1.bf16.msra.mxu0 0
    %615 = vmatprep.subr.bf16.mxu0 0
    %616 = vmatpush1.bf16.msra.mxu0 0
    %617 = vmatprep.subr.bf16.mxu0 0
    %618 = vmatpush1.bf16.msra.mxu0 0
    %619 = vmatprep.subr.bf16.mxu0 0
    %620 = vmatpush1.bf16.msra.mxu0 0
    %621 = vmatprep.mubr.bf16.mxu0 0
    %622 = vmatmul.mubr.bf16.gmra.mrb[0].mxu0 %v464
    %v623 = vpop.f32.mrb[0].mxu0
    %v624 = vadd.f32 %v583, %v623
    %v625 = vpop.f32.mrb[0].mxu0
    %v626 = vpop.f32.mrb[0].mxu0
    %v627 = vadd.f32 %v586, %v626
    %v628 = vpop.f32.mrb[0].mxu0
    %629 = vdwg.mxu0
    %v630 = vmax.f32 %v624, 0.0
    %v631 = vmax.f32 %v627, 0.0
    %v632 = vld [vmem:[%s3] sm:$0xff]
    %v633 = vld [vmem:[%s3 + $0x8] sm:$0xff]
    %v634 = vld [vmem:[%s3 + $0x10] sm:$0xff]
    %v635 = vld [vmem:[%s3 + $0x18] sm:$0xff]
    %v636 = vld [vmem:[%s3 + $0x20] sm:$0xff]
    %v637 = vld [vmem:[%s3 + $0x28] sm:$0xff]
    %v638 = vld [vmem:[%s3 + $0x30] sm:$0xff]
    %v639 = vld [vmem:[%s3 + $0x38] sm:$0xff]
    %v640 = vld [vmem:[%s3 + $0x40] sm:$0xff]
    %v641 = vld [vmem:[%s3 + $0x48] sm:$0xff]
    %v642 = vld [vmem:[%s3 + $0x50] sm:$0xff]
    %v643 = vld [vmem:[%s3 + $0x58] sm:$0xff]
    %v644 = vld [vmem:[%s3 + $0x60] sm:$0xff]
    %v645 = vld [vmem:[%s3 + $0x68] sm:$0xff]
    %v646 = vld [vmem:[%s3 + $0x70] sm:$0xff]
    %v647 = vld [vmem:[%s3 + $0x78] sm:$0xff]
    %v648 = vld [vmem:[%s4] sm:$0x1]
    %v650 = vlaneseq
    %v651 = vshrl.u32 %v650, 7
    %v652 = vsub.s32 0, %v651
    %v653 = vrot.slane %v648, %v652
    %655 = vmatprep.subr.mxu0 0.0
    %656 = vmatpush1.msra.mxu0 %v632
    %657 = vmatprep.subr.mxu0 0.0
    %658 = vmatpush1.msra.mxu0 %v633
    %659 = vmatprep.subr.mxu0 0.0
    %660 = vmatpush1.msra.mxu0 %v634
    %661 = vmatprep.subr.mxu0 0.0
    %662 = vmatpush1.msra.mxu0 %v635
    %663 = vmatprep.subr.mxu0 0.0
    %664 = vmatpush1.msra.mxu0 %v636
    %665 = vmatprep.subr.mxu0 0.0
    %666 = vmatpush1.msra.mxu0 %v637
    %667 = vmatprep.subr.mxu0 0.0
    %668 = vmatpush1.msra.mxu0 %v638
    %669 = vmatprep.subr.mxu0 0.0
    %670 = vmatpush1.msra.mxu0 %v639
    %671 = vmatprep.subr.mxu0 0.0
    %672 = vmatpush1.msra.mxu0 %v640
    %673 = vmatprep.subr.mxu0 0.0
    %674 = vmatpush1.msra.mxu0 %v641
    %675 = vmatprep.subr.mxu0 0.0
    %676 = vmatpush1.msra.mxu0 %v642
    %677 = vmatprep.subr.mxu0 0.0
    %678 = vmatpush1.msra.mxu0 %v643
    %679 = vmatprep.subr.mxu0 0.0
    %680 = vmatpush1.msra.mxu0 %v644
    %681 = vmatprep.subr.mxu0 0.0
    %682 = vmatpush1.msra.mxu0 %v645
    %683 = vmatprep.subr.mxu0 0.0
    %684 = vmatpush1.msra.mxu0 %v646
    %685 = vmatprep.subr.mxu0 0.0
    %686 = vmatpush1.msra.mxu0 %v647
    %687 = vmatprep.subr.mxu0 0.0
    %688 = vmatpush1.msra.mxu0 0.0
    %689 = vmatprep.subr.mxu0 0.0
    %690 = vmatpush1.msra.mxu0 0.0
    %691 = vmatprep.subr.mxu0 0.0
    %692 = vmatpush1.msra.mxu0 0.0
    %693 = vmatprep.subr.mxu0 0.0
    %694 = vmatpush1.msra.mxu0 0.0
    %695 = vmatprep.subr.mxu0 0.0
    %696 = vmatpush1.msra.mxu0 0.0
    %697 = vmatprep.subr.mxu0 0.0
    %698 = vmatpush1.msra.mxu0 0.0
    %699 = vmatprep.subr.mxu0 0.0
    %700 = vmatpush1.msra.mxu0 0.0
    %701 = vmatprep.subr.mxu0 0.0
    %702 = vmatpush1.msra.mxu0 0.0
    %703 = vmatprep.subr.mxu0 0.0
    %704 = vmatpush1.msra.mxu0 0.0
    %705 = vmatprep.subr.mxu0 0.0
    %706 = vmatpush1.msra.mxu0 0.0
    %707 = vmatprep.subr.mxu0 0.0
    %708 = vmatpush1.msra.mxu0 0.0
    %709 = vmatprep.subr.mxu0 0.0
    %710 = vmatpush1.msra.mxu0 0.0
    %711 = vmatprep.subr.mxu0 0.0
    %712 = vmatpush1.msra.mxu0 0.0
    %713 = vmatprep.subr.mxu0 0.0
    %714 = vmatpush1.msra.mxu0 0.0
    %715 = vmatprep.subr.mxu0 0.0
    %716 = vmatpush1.msra.mxu0 0.0
    %717 = vmatprep.subr.mxu0 0.0
    %718 = vmatpush1.msra.mxu0 0.0
    %719 = vmatprep.mubr.f32.mxu0 0.0
    %720 = vmatmul.mubr.f32.gmra.mrb[0].mxu0 %v630
    %v721 = vpop.f32.mrb[0].mxu0
    %v722 = vadd.f32 %v653, %v721
    %v723 = vpop.f32.mrb[0].mxu0
    %724 = vmatprep.mubr.f32.mxu0 0.0
    %725 = vmatmul.mubr.f32.gmra.mrb[0].mxu0 %v631
    %v726 = vpop.f32.mrb[0].mxu0
    %v727 = vadd.f32 %v653, %v726
    %v728 = vpop.f32.mrb[0].mxu0
    %729 = vdwg.mxu0
    %v730 = vmax.f32 %v722, 0.0
    %v731 = vmax.f32 %v727, 0.0
    %v732 = vld [vmem:[%s5] sm:$0xff]
    %v733 = vld [vmem:[%s5 + $0x8] sm:$0xff]
    %v734 = vld [vmem:[%s5 + $0x10] sm:$0xff]
    %v735 = vld [vmem:[%s5 + $0x18] sm:$0xff]
    %v736 = vld [vmem:[%s5 + $0x20] sm:$0xff]
    %v737 = vld [vmem:[%s5 + $0x28] sm:$0xff]
    %v738 = vld [vmem:[%s5 + $0x30] sm:$0xff]
    %v739 = vld [vmem:[%s5 + $0x38] sm:$0xff]
    %v740 = vld [vmem:[%s6] sm:$0x1]
    %v742 = vlaneseq
    %v743 = vshrl.u32 %v742, 7
    %v744 = vsub.s32 0, %v743
    %v745 = vrot.slane %v740, %v744
    %vm747 = vcmask 523264
    %v749 = vsel %vm747, %v730, 0
    %v752 = vsel %vm747, %v731, 0
    %754 = vmatprep.subr.mxu0 0.0
    %755 = vmatpush1.msra.mxu0 %v732
    %756 = vmatprep.subr.mxu0 0.0
    %757 = vmatpush1.msra.mxu0 %v733
    %758 = vmatprep.subr.mxu0 0.0
    %759 = vmatpush1.msra.mxu0 %v734
    %760 = vmatprep.subr.mxu0 0.0
    %761 = vmatpush1.msra.mxu0 %v735
    %762 = vmatprep.subr.mxu0 0.0
    %763 = vmatpush1.msra.mxu0 %v736
    %764 = vmatprep.subr.mxu0 0.0
    %765 = vmatpush1.msra.mxu0 %v737
    %766 = vmatprep.subr.mxu0 0.0
    %767 = vmatpush1.msra.mxu0 %v738
    %768 = vmatprep.subr.mxu0 0.0
    %769 = vmatpush1.msra.mxu0 %v739
    %770 = vmatprep.subr.mxu0 0.0
    %771 = vmatpush1.msra.mxu0 0.0
    %772 = vmatprep.subr.mxu0 0.0
    %773 = vmatpush1.msra.mxu0 0.0
    %774 = vmatprep.subr.mxu0 0.0
    %775 = vmatpush1.msra.mxu0 0.0
    %776 = vmatprep.subr.mxu0 0.0
    %777 = vmatpush1.msra.mxu0 0.0
    %778 = vmatprep.subr.mxu0 0.0
    %779 = vmatpush1.msra.mxu0 0.0
    %780 = vmatprep.subr.mxu0 0.0
    %781 = vmatpush1.msra.mxu0 0.0
    %782 = vmatprep.subr.mxu0 0.0
    %783 = vmatpush1.msra.mxu0 0.0
    %784 = vmatprep.subr.mxu0 0.0
    %785 = vmatpush1.msra.mxu0 0.0
    %786 = vmatprep.subr.mxu0 0.0
    %787 = vmatpush1.msra.mxu0 0.0
    %788 = vmatprep.subr.mxu0 0.0
    %789 = vmatpush1.msra.mxu0 0.0
    %790 = vmatprep.subr.mxu0 0.0
    %791 = vmatpush1.msra.mxu0 0.0
    %792 = vmatprep.subr.mxu0 0.0
    %793 = vmatpush1.msra.mxu0 0.0
    %794 = vmatprep.subr.mxu0 0.0
    %795 = vmatpush1.msra.mxu0 0.0
    %796 = vmatprep.subr.mxu0 0.0
    %797 = vmatpush1.msra.mxu0 0.0
    %798 = vmatprep.subr.mxu0 0.0
    %799 = vmatpush1.msra.mxu0 0.0
    %800 = vmatprep.subr.mxu0 0.0
    %801 = vmatpush1.msra.mxu0 0.0
    %802 = vmatprep.subr.mxu0 0.0
    %803 = vmatpush1.msra.mxu0 0.0
    %804 = vmatprep.subr.mxu0 0.0
    %805 = vmatpush1.msra.mxu0 0.0
    %806 = vmatprep.subr.mxu0 0.0
    %807 = vmatpush1.msra.mxu0 0.0
    %808 = vmatprep.subr.mxu0 0.0
    %809 = vmatpush1.msra.mxu0 0.0
    %810 = vmatprep.subr.mxu0 0.0
    %811 = vmatpush1.msra.mxu0 0.0
    %812 = vmatprep.subr.mxu0 0.0
    %813 = vmatpush1.msra.mxu0 0.0
    %814 = vmatprep.subr.mxu0 0.0
    %815 = vmatpush1.msra.mxu0 0.0
    %816 = vmatprep.subr.mxu0 0.0
    %817 = vmatpush1.msra.mxu0 0.0
    %818 = vmatprep.mubr.f32.mxu0 0.0
    %819 = vmatmul.mubr.f32.gmra.mrb[0].mxu0 %v749
    %v820 = vpop.f32.mrb[0].mxu0
    %v821 = vadd.f32 %v745, %v820
    %v822 = vpop.f32.mrb[0].mxu0
    %823 = vmatprep.mubr.f32.mxu0 0.0
    %824 = vmatmul.mubr.f32.gmra.mrb[0].mxu0 %v752
    %v825 = vpop.f32.mrb[0].mxu0
    %v826 = vadd.f32 %v745, %v825
    %v827 = vpop.f32.mrb[0].mxu0
    %828 = vdwg.mxu0
    %v829 = vpack.c.bf16 %v826, %v821
    %v831 = vunpack.c.l.b16 %v829
    %v832 = vunpack.c.h.b16 %v829
    %v833 = vpack.c.b16 %v831, %v831
    %v834 = vpack.c.b16 %v832, %v832
    %837 = vst [vmem:[#allocation5] sm:$0xf] %v833
    %838 = vst [vmem:[#allocation5 + $0x4] sm:$0xf] %v834
    // Predicated region
    $region34: #{tpu_custom_call.1} parent=1 // pred_check
      _
    $region35: #{tpu_custom_call.1} parent=1 // pred_check_branch
      %840 = sbr.rel (0) target = $region37
    $region36: #{tpu_custom_call.1} parent=1 // pred_region
      %s842 = ssub.s32 128, 128
      %843 = vsyncadd [#allocation4], %s842
      %s844 = sshll.u32 [#allocation5], 4
      %s845 = int_to_ptr.vmem [resolvable:$true] %s844
      %850 = dma.vmem_to_hbm [thread:$0]  %s845, 128, %s7, [#allocation4], 64, 64, 4
    $region37: #{tpu_custom_call.1} parent=1 // pred_fallthru
      _
    // Predicated region
    $region38: #{tpu_custom_call.1} parent=1 // pred_check
      _
    $region39: #{tpu_custom_call.1} parent=1 // pred_check_branch
      %852 = sbr.rel (0) target = $region41
    $region40: #{tpu_custom_call.1} parent=1 // pred_region
      %853 = dma.done [#allocation4], 128
    $region41: #{tpu_custom_call.1} parent=1 // pred_fallthru
      _
    %854 = vsyncpa [#allocation3], 1
    %855 = vsyncpa [#allocation4], 1

</llo_original>
